<compile_context>
chip_gen: v6e
topology: v6e:2x2x1
jax: 0.10.0
libtpu: 0.0.40
codegen_flags: <defaults>
</compile_context>

<pallas_src>
import functools
import math

import jax
import jax.numpy as jnp
from jax.experimental import pallas as pl
from jax.experimental.pallas import tpu as pltpu


def _cdiv(a, b):
    return -(-a // b)


def _round_up(a, b):
    return _cdiv(a, b) * b


def _triplet_kernel(a_ref, p_ref, n_ref, o_ref, *, margin, k, dim,
                    block_rows, valid_rows):
    a = a_ref[...].astype(jnp.float32)
    p = p_ref[...].astype(jnp.float32)
    n = n_ref[...].astype(jnp.float32)

    # (a-p)^2 - (a-n)^2 == (p - n) * (p + n - 2a): one product, one reduction.
    prod = (p - n) * (p + n - 2.0 * a)                    # (block_rows, k*dim)

    # Grouped reduction through the (otherwise idle) MXU: block-diagonal 0/1
    # selector seg[c, j] = 1 iff column c belongs to folded group j.
    d2 = k * dim
    col = jax.lax.broadcasted_iota(jnp.int32, (d2, k), 0)
    grp = jax.lax.broadcasted_iota(jnp.int32, (d2, k), 1) * dim
    seg = jnp.logical_and(col >= grp, col < grp + dim).astype(jnp.float32)
    per = jnp.dot(prod, seg, preferred_element_type=jnp.float32)  # (rows, k)

    loss = jnp.maximum(per + jnp.float32(margin), 0.0)

    # Mask folded rows past the end of the (possibly ragged) last block.
    row = jax.lax.broadcasted_iota(jnp.int32, per.shape, 0)
    base = pl.program_id(0) * block_rows
    loss = jnp.where(base + row < valid_rows, loss, 0.0)

    # One lane-dense (8,128) tile per grid step carrying this block's sum.
    psum = jnp.sum(jnp.sum(loss, axis=1, keepdims=True), axis=0, keepdims=True)
    o_ref[...] = jnp.broadcast_to(psum, (8, 128))


def triplet_loss(anchor, positive, negative, *, margin=1.0, size_average=True):
    """Pallas implementation of TripletLoss.forward (returns a scalar)."""
    assert anchor.ndim == 2, "expects (batch, embedding_dim) inputs"
    B, D = anchor.shape
    assert positive.shape == (B, D) and negative.shape == (B, D)
    itemsize = jnp.dtype(anchor.dtype).itemsize

    # ---- lane-density fold: pack k consecutive rows into one folded row ----
    k = 128 // math.gcd(D, 128)          # full-lane fold factor (lcm(D,128)/D)
    k = math.gcd(k, B)                   # must divide the batch -> no padding
    while k > 1 and k * D > 2048:        # keep folded rows a sane lane width
        k //= 2
    D2 = k * D
    R = B // k                           # folded row count

    # ---- tile sizing against generation-aware VMEM -------------------------
    try:
        vmem_cap = int(pltpu.get_tpu_info().vmem_capacity_bytes)
    except Exception:
        vmem_cap = 128 * 1024 * 1024
    budget = min(24 * 1024 * 1024, vmem_cap // 2)   # 3 inputs x 2 buffers
    row_align = max(8, (8 * 4) // itemsize)         # 8 f32 / 16 bf16 / 32 int8
    row_bytes = 3 * 2 * D2 * itemsize               # double-buffered input row
    cap_rows = max(row_align, (budget // row_bytes) // row_align * row_align)
    cap_rows = min(cap_rows, 4096)

    if R < 2 * row_align:
        # Tiny problem: one block covering the full row extent is always legal.
        block_rows, num_blocks = max(R, 1), 1
    else:
        # >= 2 balanced blocks so the parallel axis feeds both v7x TensorCores.
        num_blocks = max(2, _cdiv(R, cap_rows))
        block_rows = min(_round_up(_cdiv(R, num_blocks), row_align), cap_rows)
        num_blocks = _cdiv(R, block_rows)

    # Free, row-major contiguous reshape (k divides B by construction).
    a2 = anchor.reshape(R, D2)
    p2 = positive.reshape(R, D2)
    n2 = negative.reshape(R, D2)

    emb_spec = pl.BlockSpec((block_rows, D2), lambda i: (i, 0))
    out_spec = pl.BlockSpec((8, 128), lambda i: (i, 0))

    tile_bytes = block_rows * D2 * itemsize
    vmem_limit = int(min(vmem_cap,
                         max(32 * 1024 * 1024, 3 * 2 * tile_bytes + (2 << 20))))

    kernel = functools.partial(
        _triplet_kernel, margin=float(margin), k=k, dim=D,
        block_rows=block_rows, valid_rows=R)

    partial_sums = pl.pallas_call(
        kernel,
        out_shape=jax.ShapeDtypeStruct((num_blocks * 8, 128), jnp.float32),
        grid_spec=pltpu.PrefetchScalarGridSpec(
            num_scalar_prefetch=0,
            grid=(num_blocks,),
            in_specs=[emb_spec, emb_spec, emb_spec],
            out_specs=out_spec,
        ),
        compiler_params=pltpu.CompilerParams(
            dimension_semantics=("parallel",),
            vmem_limit_bytes=vmem_limit,
        ),
    )(a2, p2, n2)

    # Every element of each block's (8,128) tile holds that block's sum.
    total = jnp.sum(partial_sums.reshape(num_blocks, 8, 128)[:, 0, 0])
    return total / B if size_average else total


def _reference(anchor, positive, negative, margin, size_average=True):
    dp = jnp.sum((anchor - positive) ** 2, axis=1)
    dn = jnp.sum((anchor - negative) ** 2, axis=1)
    losses = jnp.maximum(dp - dn + margin, 0.0)
    return losses.mean() if size_average else losses.sum()


if __name__ == "__main__":
    key = jax.random.PRNGKey(0)
    ka, kp, kn = jax.random.split(key, 3)
    B, D = 16, 32
    margin = 1.0

    anchor = jax.random.normal(ka, (B, D), dtype=jnp.float32)
    positive = jax.random.normal(kp, (B, D), dtype=jnp.float32)
    negative = jax.random.normal(kn, (B, D), dtype=jnp.float32)

    loss_mean = triplet_loss(anchor, positive, negative, margin=margin,
                             size_average=True)
    loss_sum = triplet_loss(anchor, positive, negative, margin=margin,
                            size_average=False)
    jax.block_until_ready((loss_mean, loss_sum))

    ref_mean = _reference(anchor, positive, negative, margin, True)
    ref_sum = _reference(anchor, positive, negative, margin, False)
    assert jnp.allclose(loss_mean, ref_mean, rtol=1e-4, atol=1e-4), (
        loss_mean, ref_mean)
    assert jnp.allclose(loss_sum, ref_sum, rtol=1e-4, atol=1e-4), (
        loss_sum, ref_sum)

    # Exercise the un-foldable / ragged-last-block / two-block path.
    kb = jax.random.split(jax.random.PRNGKey(1), 3)
    Bb, Dd = 37, 24
    ab = jax.random.normal(kb[0], (Bb, Dd), dtype=jnp.float32)
    pb = jax.random.normal(kb[1], (Bb, Dd), dtype=jnp.float32)
    nb = jax.random.normal(kb[2], (Bb, Dd), dtype=jnp.float32)
    got = triplet_loss(ab, pb, nb, margin=0.5, size_average=True)
    jax.block_until_ready(got)
    assert jnp.allclose(got, _reference(ab, pb, nb, 0.5, True),
                        rtol=1e-4, atol=1e-4), got

    print("KERNEL_OK")
</pallas_src>

<mosaic_0001>
module attributes {stable_mosaic.version = 11 : i64} {
  func.func @_triplet_kernel(%arg0: i32, %arg1: memref<4x128xf32, #tpu.memory_space<vmem>>, %arg2: memref<4x128xf32, #tpu.memory_space<vmem>>, %arg3: memref<4x128xf32, #tpu.memory_space<vmem>>, %arg4: memref<8x128xf32, #tpu.memory_space<vmem>>) attributes {dimension_semantics = [#tpu.dimension_semantics<parallel>], iteration_bounds = array<i64: 1>, scalar_prefetch = 0 : i64, scratch_operands = 0 : i64, tpu.core_type = #tpu.core_type<tc>, window_params = [{transform_indices = @transform_0, window_bounds = array<i64: 4, 128>}, {transform_indices = @transform_1, window_bounds = array<i64: 4, 128>}, {transform_indices = @transform_2, window_bounds = array<i64: 4, 128>}, {transform_indices = @transform_3, window_bounds = array<i64: 8, 128>}]} {
    %c0 = arith.constant 0 : index
    %c0_0 = arith.constant 0 : index
    %0 = vector.load %arg1[%c0, %c0_0] : memref<4x128xf32, #tpu.memory_space<vmem>>, vector<4x128xf32>
    %c0_1 = arith.constant 0 : index
    %c0_2 = arith.constant 0 : index
    %1 = vector.load %arg2[%c0_1, %c0_2] : memref<4x128xf32, #tpu.memory_space<vmem>>, vector<4x128xf32>
    %c0_3 = arith.constant 0 : index
    %c0_4 = arith.constant 0 : index
    %2 = vector.load %arg3[%c0_3, %c0_4] : memref<4x128xf32, #tpu.memory_space<vmem>>, vector<4x128xf32>
    %3 = arith.subf %1, %2 : vector<4x128xf32>
    %4 = arith.addf %1, %2 : vector<4x128xf32>
    %cst = arith.constant 2.000000e+00 : f32
    %5 = vector.broadcast %cst : f32 to vector<4x128xf32>
    %6 = arith.mulf %5, %0 : vector<4x128xf32>
    %7 = arith.subf %4, %6 : vector<4x128xf32>
    %8 = arith.mulf %3, %7 : vector<4x128xf32>
    %9 = tpu.iota {dimensions = array<i32: 0>} : vector<128x4xi32>
    %10 = tpu.iota {dimensions = array<i32: 1>} : vector<128x4xi32>
    %c32_i32 = arith.constant 32 : i32
    %11 = vector.broadcast %c32_i32 : i32 to vector<128x4xi32>
    %12 = arith.muli %10, %11 : vector<128x4xi32>
    %13 = arith.cmpi sge, %9, %12 : vector<128x4xi32>
    %c32_i32_5 = arith.constant 32 : i32
    %14 = vector.broadcast %c32_i32_5 : i32 to vector<128x4xi32>
    %15 = arith.addi %12, %14 : vector<128x4xi32>
    %16 = arith.cmpi slt, %9, %15 : vector<128x4xi32>
    %17 = arith.andi %13, %16 : vector<128x4xi1>
    %18 = arith.extui %17 : vector<128x4xi1> to vector<128x4xi32>
    %19 = arith.sitofp %18 : vector<128x4xi32> to vector<128x4xf32>
    %cst_6 = arith.constant dense<0.000000e+00> : vector<4x4xf32>
    %20 = tpu.matmul %8, %19, %cst_6 {dimension_numbers = #tpu.dot_dimension_numbers<[1], [0], [0], [1], [0, 0, 1, 1], [], []>} : vector<4x128xf32>, vector<128x4xf32>, vector<4x4xf32> -> vector<4x4xf32>
    %cst_7 = arith.constant 1.000000e+00 : f32
    %21 = vector.broadcast %cst_7 : f32 to vector<4x4xf32>
    %22 = arith.addf %20, %21 : vector<4x4xf32>
    %cst_8 = arith.constant 0.000000e+00 : f32
    %23 = vector.broadcast %cst_8 : f32 to vector<4x4xf32>
    %24 = arith.maximumf %22, %23 : vector<4x4xf32>
    %25 = tpu.iota {dimensions = array<i32: 0>} : vector<4x4xi32>
    %c4_i32 = arith.constant 4 : i32
    %26 = arith.muli %arg0, %c4_i32 : i32
    %27 = vector.broadcast %26 : i32 to vector<4x4xi32>
    %28 = arith.addi %27, %25 : vector<4x4xi32>
    %c4_i32_9 = arith.constant 4 : i32
    %29 = vector.broadcast %c4_i32_9 : i32 to vector<4x4xi32>
    %30 = arith.cmpi slt, %28, %29 : vector<4x4xi32>
    %cst_10 = arith.constant 0.000000e+00 : f32
    %31 = vector.broadcast %cst_10 : f32 to vector<4x4xf32>
    %32 = arith.select %30, %24, %31 : vector<4x4xi1>, vector<4x4xf32>
    %cst_11 = arith.constant dense<0.000000e+00> : vector<4xf32>
    %33 = vector.multi_reduction <add>, %32, %cst_11 [1] : vector<4x4xf32> to vector<4xf32>
    %34 = vector.shape_cast %33 : vector<4xf32> to vector<4x1xf32>
    %cst_12 = arith.constant dense<0.000000e+00> : vector<1xf32>
    %35 = vector.multi_reduction <add>, %34, %cst_12 [0] : vector<4x1xf32> to vector<1xf32>
    %36 = vector.shape_cast %35 : vector<1xf32> to vector<1x1xf32>
    %37 = vector.shape_cast %36 : vector<1x1xf32> to vector<1x1xf32>
    %38 = vector.broadcast %37 : vector<1x1xf32> to vector<8x128xf32>
    %c0_13 = arith.constant 0 : index
    %c0_14 = arith.constant 0 : index
    %39 = vector.load %arg4[%c0_13, %c0_14] : memref<8x128xf32, #tpu.memory_space<vmem>>, vector<8x128xf32>
    tpu.vector_store %arg4[%c0_13, %c0_14], %38 {strides = array<i32>} : memref<8x128xf32, #tpu.memory_space<vmem>>, vector<8x128xf32>,
    return
  }
  func.func @transform_0(%arg0: i32) -> (i32, i32) {
    %c0_i32 = arith.constant 0 : i32
    %c0_i32_0 = arith.constant 0 : i32
    return %arg0, %c0_i32 : i32, i32
  }
  func.func @transform_1(%arg0: i32) -> (i32, i32) {
    %c0_i32 = arith.constant 0 : i32
    %c0_i32_0 = arith.constant 0 : i32
    return %arg0, %c0_i32 : i32, i32
  }
  func.func @transform_2(%arg0: i32) -> (i32, i32) {
    %c0_i32 = arith.constant 0 : i32
    %c0_i32_0 = arith.constant 0 : i32
    return %arg0, %c0_i32 : i32, i32
  }
  func.func @transform_3(%arg0: i32) -> (i32, i32) {
    %c0_i32 = arith.constant 0 : i32
    %c0_i32_0 = arith.constant 0 : i32
    return %arg0, %c0_i32 : i32, i32
  }
}

</mosaic_0001>

<llo_original>
// kernel: tpu_custom_call.1
$region0: #{tpu_custom_call.1}
  #allocation0 [shape = 'u32[]', space=smem, size = 0x4, offset = 0x4, fixed_abs, tag = 'smem constant byte address 0x4 - core index']
  #allocation1 [shape = 'u32[144,128]{1,0:T(1,128)}', space=vmem, size = 0x12000, scoped, tag = 'internal scratch']
  %s0 = inlined_call_operand.hbm [shape: f32[4,128], index: 0, kind: input, shape index: {}]
  %s1 = inlined_call_operand.hbm [shape: f32[4,128], index: 1, kind: input, shape index: {}]
  %s2 = inlined_call_operand.hbm [shape: f32[4,128], index: 2, kind: input, shape index: {}]
  %s3 = inlined_call_operand.hbm [shape: f32[8,128], index: 3, kind: output, shape index: {}]
  %s4 = sld [smem:[#allocation0]]
  $region34: #{tpu_custom_call.1} parent=0
    _
  %s6 = ssub.s32 1, %s4
  %s7 = scalar_select 0, %s6, %s4
  $region1: #{tpu_custom_call.1} parent=0
    #allocation2 [shape = 'u8[2048]{0}', space=vmem, size = 0x800, scoped, tag = 'input window, operand 0, single buffered']
    #allocation3 [shape = 's32[1]{0}', space=sflag, size = 0x4, scoped, tag = 'scoped memory for tpu_custom_call.1']
    #allocation4 [shape = 's32[1]{0}', space=sflag, size = 0x4, scoped, tag = 'scoped memory for tpu_custom_call.1']
    #allocation5 [shape = 'u8[2048]{0}', space=vmem, size = 0x800, scoped, tag = 'input window, operand 1, single buffered']
    #allocation6 [shape = 's32[1]{0}', space=sflag, size = 0x4, scoped, tag = 'scoped memory for tpu_custom_call.1']
    #allocation7 [shape = 'u8[2048]{0}', space=vmem, size = 0x800, scoped, tag = 'input window, operand 2, single buffered']
    #allocation8 [shape = 'u8[4096]{0}', space=vmem, size = 0x1000, scoped, tag = 'output window, operand 0, single buffered']
    %8 = vsyncpa [#allocation3], 0
    %9 = vsyncpa [#allocation6], 0
    %10 = vsyncpa [#allocation4], 0
    // Predicated region
    $region2: #{tpu_custom_call.1} parent=1 // pred_check
      _
    $region3: #{tpu_custom_call.1} parent=1 // pred_check_branch
      %12 = sbr.rel (0) target = $region5
    $region4: #{tpu_custom_call.1} parent=1 // pred_region
      %s14 = ssub.s32 64, 64
      %15 = vsyncadd [#allocation3], %s14
      %s17 = sshll.u32 [#allocation2], 4
      %s18 = int_to_ptr.vmem [resolvable:$true] %s17
      %20 = dma.hbm_to_vmem [thread:$0]  %s0, 64, %s18, [#allocation3]
    $region5: #{tpu_custom_call.1} parent=1 // pred_fallthru
      _
    // Predicated region
    $region6: #{tpu_custom_call.1} parent=1 // pred_check
      _
    $region7: #{tpu_custom_call.1} parent=1 // pred_check_branch
      %22 = sbr.rel (0) target = $region9
    $region8: #{tpu_custom_call.1} parent=1 // pred_region
      %s24 = ssub.s32 64, 64
      %25 = vsyncadd [#allocation6], %s24
      %s27 = sshll.u32 [#allocation5], 4
      %s28 = int_to_ptr.vmem [resolvable:$true] %s27
      %30 = dma.hbm_to_vmem [thread:$0]  %s1, 64, %s28, [#allocation6]
    $region9: #{tpu_custom_call.1} parent=1 // pred_fallthru
      _
    // Predicated region
    $region10: #{tpu_custom_call.1} parent=1 // pred_check
      _
    $region11: #{tpu_custom_call.1} parent=1 // pred_check_branch
      %32 = sbr.rel (0) target = $region13
    $region12: #{tpu_custom_call.1} parent=1 // pred_region
      %s34 = ssub.s32 64, 64
      %35 = vsyncadd [#allocation6], %s34
      %s37 = sshll.u32 [#allocation7], 4
      %s38 = int_to_ptr.vmem [resolvable:$true] %s37
      %40 = dma.hbm_to_vmem [thread:$0]  %s2, 64, %s38, [#allocation6]
    $region13: #{tpu_custom_call.1} parent=1 // pred_fallthru
      _
    // Predicated region
    $region14: #{tpu_custom_call.1} parent=1 // pred_check
      _
    $region15: #{tpu_custom_call.1} parent=1 // pred_check_branch
      %42 = sbr.rel (0) target = $region17
    $region16: #{tpu_custom_call.1} parent=1 // pred_region
      %43 = dma.done [#allocation3], 64
    $region17: #{tpu_custom_call.1} parent=1 // pred_fallthru
      _
    // Predicated region
    $region18: #{tpu_custom_call.1} parent=1 // pred_check
      _
    $region19: #{tpu_custom_call.1} parent=1 // pred_check_branch
      %45 = sbr.rel (0) target = $region21
    $region20: #{tpu_custom_call.1} parent=1 // pred_region
      %46 = dma.done [#allocation6], 64
    $region21: #{tpu_custom_call.1} parent=1 // pred_fallthru
      _
    // Predicated region
    $region22: #{tpu_custom_call.1} parent=1 // pred_check
      _
    $region23: #{tpu_custom_call.1} parent=1 // pred_check_branch
      %48 = sbr.rel (0) target = $region25
    $region24: #{tpu_custom_call.1} parent=1 // pred_region
      %49 = dma.done [#allocation6], 64
    $region25: #{tpu_custom_call.1} parent=1 // pred_fallthru
      _
    %v50 = vld [vmem:[#allocation2] sm:$0xf]
    %v51 = vld [vmem:[#allocation5] sm:$0xf]
    %v52 = vld [vmem:[#allocation7] sm:$0xf]
    %v53 = vsub.f32 %v51, %v52
    %v54 = vadd.f32 %v51, %v52
    %v55 = vmul.f32 %v50, 2.0
    %v56 = vsub.f32 %v54, %v55
    %v57 = vmul.f32 %v53, %v56
    %v58 = vlaneseq
    %v59 = vshrl.u32 %v58, 7
    %v60 = vadd.s32 %v59, 8
    %v61 = vadd.s32 %v59, 16
    %v62 = vadd.s32 %v59, 24
    %v63 = vadd.s32 %v59, 32
    %v64 = vadd.s32 %v59, 40
    %v65 = vadd.s32 %v59, 48
    %v66 = vadd.s32 %v59, 56
    %v67 = vadd.s32 %v59, 64
    %v68 = vadd.s32 %v59, 72
    %v69 = vadd.s32 %v59, 80
    %v70 = vadd.s32 %v59, 88
    %v71 = vadd.s32 %v59, 96
    %v72 = vadd.s32 %v59, 104
    %v73 = vadd.s32 %v59, 112
    %v74 = vadd.s32 %v59, 120
    %v75 = vlaneseq
    %v76 = vand.u32 %v75, 127
    %v77 = vmul.u32 %v76, 32
    %vm78 = vcmp.ge.s32.totalorder %v59, %v77
    %vm79 = vcmp.ge.s32.totalorder %v60, %v77
    %vm80 = vcmp.ge.s32.totalorder %v61, %v77
    %vm81 = vcmp.ge.s32.totalorder %v62, %v77
    %vm82 = vcmp.ge.s32.totalorder %v63, %v77
    %vm83 = vcmp.ge.s32.totalorder %v64, %v77
    %vm84 = vcmp.ge.s32.totalorder %v65, %v77
    %vm85 = vcmp.ge.s32.totalorder %v66, %v77
    %vm86 = vcmp.ge.s32.totalorder %v67, %v77
    %vm87 = vcmp.ge.s32.totalorder %v68, %v77
    %vm88 = vcmp.ge.s32.totalorder %v69, %v77
    %vm89 = vcmp.ge.s32.totalorder %v70, %v77
    %vm90 = vcmp.ge.s32.totalorder %v71, %v77
    %vm91 = vcmp.ge.s32.totalorder %v72, %v77
    %vm92 = vcmp.ge.s32.totalorder %v73, %v77
    %vm93 = vcmp.ge.s32.totalorder %v74, %v77
    %v94 = vadd.s32 %v77, 32
    %vm95 = vcmp.lt.s32.totalorder %v59, %v94
    %vm96 = vcmp.lt.s32.totalorder %v60, %v94
    %vm97 = vcmp.lt.s32.totalorder %v61, %v94
    %vm98 = vcmp.lt.s32.totalorder %v62, %v94
    %vm99 = vcmp.lt.s32.totalorder %v63, %v94
    %vm100 = vcmp.lt.s32.totalorder %v64, %v94
    %vm101 = vcmp.lt.s32.totalorder %v65, %v94
    %vm102 = vcmp.lt.s32.totalorder %v66, %v94
    %vm103 = vcmp.lt.s32.totalorder %v67, %v94
    %vm104 = vcmp.lt.s32.totalorder %v68, %v94
    %vm105 = vcmp.lt.s32.totalorder %v69, %v94
    %vm106 = vcmp.lt.s32.totalorder %v70, %v94
    %vm107 = vcmp.lt.s32.totalorder %v71, %v94
    %vm108 = vcmp.lt.s32.totalorder %v72, %v94
    %vm109 = vcmp.lt.s32.totalorder %v73, %v94
    %vm110 = vcmp.lt.s32.totalorder %v74, %v94
    %vm111 = vmand %vm78, %vm95
    %vm112 = vmand %vm79, %vm96
    %vm113 = vmand %vm80, %vm97
    %vm114 = vmand %vm81, %vm98
    %vm115 = vmand %vm82, %vm99
    %vm116 = vmand %vm83, %vm100
    %vm117 = vmand %vm84, %vm101
    %vm118 = vmand %vm85, %vm102
    %vm119 = vmand %vm86, %vm103
    %vm120 = vmand %vm87, %vm104
    %vm121 = vmand %vm88, %vm105
    %vm122 = vmand %vm89, %vm106
    %vm123 = vmand %vm90, %vm107
    %vm124 = vmand %vm91, %vm108
    %vm125 = vmand %vm92, %vm109
    %vm126 = vmand %vm93, %vm110
    %v127 = vsel %vm111, 1, 0
    %v128 = vsel %vm112, 1, 0
    %v129 = vsel %vm113, 1, 0
    %v130 = vsel %vm114, 1, 0
    %v131 = vsel %vm115, 1, 0
    %v132 = vsel %vm116, 1, 0
    %v133 = vsel %vm117, 1, 0
    %v134 = vsel %vm118, 1, 0
    %v135 = vsel %vm119, 1, 0
    %v136 = vsel %vm120, 1, 0
    %v137 = vsel %vm121, 1, 0
    %v138 = vsel %vm122, 1, 0
    %v139 = vsel %vm123, 1, 0
    %v140 = vsel %vm124, 1, 0
    %v141 = vsel %vm125, 1, 0
    %v142 = vsel %vm126, 1, 0
    %v143 = vcvt.s32.f32 %v127
    %v144 = vcvt.s32.f32 %v128
    %v145 = vcvt.s32.f32 %v129
    %v146 = vcvt.s32.f32 %v130
    %v147 = vcvt.s32.f32 %v131
    %v148 = vcvt.s32.f32 %v132
    %v149 = vcvt.s32.f32 %v133
    %v150 = vcvt.s32.f32 %v134
    %v151 = vcvt.s32.f32 %v135
    %v152 = vcvt.s32.f32 %v136
    %v153 = vcvt.s32.f32 %v137
    %v154 = vcvt.s32.f32 %v138
    %v155 = vcvt.s32.f32 %v139
    %v156 = vcvt.s32.f32 %v140
    %v157 = vcvt.s32.f32 %v141
    %v158 = vcvt.s32.f32 %v142
    %159 = vmatprep.subr.mxu0 0.0
    %160 = vmatpush1.msra.mxu0 %v158
    %161 = vmatprep.subr.mxu0 0.0
    %162 = vmatpush1.msra.mxu0 %v157
    %163 = vmatprep.subr.mxu0 0.0
    %164 = vmatpush1.msra.mxu0 %v156
    %165 = vmatprep.subr.mxu0 0.0
    %166 = vmatpush1.msra.mxu0 %v155
    %167 = vmatprep.subr.mxu0 0.0
    %168 = vmatpush1.msra.mxu0 %v154
    %169 = vmatprep.subr.mxu0 0.0
    %170 = vmatpush1.msra.mxu0 %v153
    %171 = vmatprep.subr.mxu0 0.0
    %172 = vmatpush1.msra.mxu0 %v152
    %173 = vmatprep.subr.mxu0 0.0
    %174 = vmatpush1.msra.mxu0 %v151
    %175 = vmatprep.subr.mxu0 0.0
    %176 = vmatpush1.msra.mxu0 %v150
    %177 = vmatprep.subr.mxu0 0.0
    %178 = vmatpush1.msra.mxu0 %v149
    %179 = vmatprep.subr.mxu0 0.0
    %180 = vmatpush1.msra.mxu0 %v148
    %181 = vmatprep.subr.mxu0 0.0
    %182 = vmatpush1.msra.mxu0 %v147
    %183 = vmatprep.subr.mxu0 0.0
    %184 = vmatpush1.msra.mxu0 %v146
    %185 = vmatprep.subr.mxu0 0.0
    %186 = vmatpush1.msra.mxu0 %v145
    %187 = vmatprep.subr.mxu0 0.0
    %188 = vmatpush1.msra.mxu0 %v144
    %189 = vmatprep.subr.mxu0 0.0
    %190 = vmatpush1.msra.mxu0 %v143
    %191 = vmatprep.subr.mxu0 0.0
    %192 = vmatpush2.msra.mxu0 0.0
    %193 = vmatprep.subr.mxu0 0.0
    %194 = vmatpush2.msra.mxu0 0.0
    %195 = vmatprep.subr.mxu0 0.0
    %196 = vmatpush2.msra.mxu0 0.0
    %197 = vmatprep.subr.mxu0 0.0
    %198 = vmatpush2.msra.mxu0 0.0
    %199 = vmatprep.subr.mxu0 0.0
    %200 = vmatpush2.msra.mxu0 0.0
    %201 = vmatprep.subr.mxu0 0.0
    %202 = vmatpush2.msra.mxu0 0.0
    %203 = vmatprep.subr.mxu0 0.0
    %204 = vmatpush2.msra.mxu0 0.0
    %205 = vmatprep.subr.mxu0 0.0
    %206 = vmatpush2.msra.mxu0 0.0
    %207 = vmatprep.subr.mxu0 0.0
    %208 = vmatpush2.msra.mxu0 0.0
    %209 = vmatprep.subr.mxu0 0.0
    %210 = vmatpush2.msra.mxu0 0.0
    %211 = vmatprep.subr.mxu0 0.0
    %212 = vmatpush2.msra.mxu0 0.0
    %213 = vmatprep.subr.mxu0 0.0
    %214 = vmatpush2.msra.mxu0 0.0
    %215 = vmatprep.subr.mxu0 0.0
    %216 = vmatpush2.msra.mxu0 0.0
    %217 = vmatprep.subr.mxu0 0.0
    %218 = vmatpush2.msra.mxu0 0.0
    %219 = vmatprep.subr.mxu0 0.0
    %220 = vmatpush2.msra.mxu0 0.0
    %221 = vmatprep.subr.mxu0 0.0
    %222 = vmatpush2.msra.mxu0 0.0
    %223 = vmatprep.mubr.f32.mxu0 0.0
    %224 = vmatmul.mubr.f32.gmra.mxu0 %v57
    %v225 = vpop.f32.mrf.mxu0
    %v226 = vadd.f32 1.0, %v225
    %v227 = vpop.f32.mrf.mxu0
    %228 = vdwg.mxu0
    %v229 = vmax.f32 %v226, 0.0
    %s230 = smul.u32 0, 4
    %v231 = vstv %s230
    %v232 = vadd.s32 %v231, %v59
    %vm233 = vcmp.lt.s32.totalorder %v232, 4
    %v234 = vsel %vm233, %v229, 0.0
    %vm235 = vcmask 27648
    %v236 = vsel %vm235, %v234, 0.0
    %237 = vadd.xlane.f32.xlu0 %v236
    %v238 = vpop.xlane.xlu0 %237
    %vm239 = vcmask 1043456
    %v240 = vsel %vm239, %v238, 0.0
    %v241 = vrot.slane %v240, 4
    %v242 = vadd.f32 %v240, %v241
    %v243 = vrot.slane %v242, 2
    %v244 = vadd.f32 %v242, %v243
    %v245 = vrot.slane %v244, 1
    %v246 = vadd.f32 %v244, %v245
    %247 = vst [vmem:[#allocation8] sm:$0xff] %v246
    // Predicated region
    $region26: #{tpu_custom_call.1} parent=1 // pred_check
      _
    $region27: #{tpu_custom_call.1} parent=1 // pred_check_branch
      %249 = sbr.rel (0) target = $region29
    $region28: #{tpu_custom_call.1} parent=1 // pred_region
      %s251 = ssub.s32 128, 128
      %252 = vsyncadd [#allocation4], %s251
      %s254 = sshll.u32 [#allocation8], 4
      %s255 = int_to_ptr.vmem [resolvable:$true] %s254
      %257 = dma.vmem_to_hbm [thread:$0]  %s255, 128, %s3, [#allocation4]
    $region29: #{tpu_custom_call.1} parent=1 // pred_fallthru
      _
    // Predicated region
    $region30: #{tpu_custom_call.1} parent=1 // pred_check
      _
    $region31: #{tpu_custom_call.1} parent=1 // pred_check_branch
      %259 = sbr.rel (0) target = $region33
    $region32: #{tpu_custom_call.1} parent=1 // pred_region
      %260 = dma.done [#allocation4], 128
    $region33: #{tpu_custom_call.1} parent=1 // pred_fallthru
      _
    %261 = vsyncpa [#allocation3], 1
    %262 = vsyncpa [#allocation6], 1
    %263 = vsyncpa [#allocation4], 1

</llo_original>
